<compile_context>
chip_gen: v7x
topology: tpu7x:2x2x1
jax: 0.10.0
libtpu: 0.0.40
codegen_flags: <defaults>
</compile_context>

<pallas_src>
import functools

import jax
import jax.numpy as jnp
from jax.experimental import pallas as pl
from jax.experimental.pallas import tpu as pltpu

_LANE = 128


def _charbonnier_kernel(x_ref, y_ref, out_ref, *, eps, valid_rows):
    c = pl.program_id(0)           # core / parallel axis
    j = pl.program_id(1)           # reduction axis (sequential per core)

    @pl.when(j == 0)
    def _():
        out_ref[...] = jnp.zeros_like(out_ref)

    tile_rows = x_ref.shape[0]
    logical_block = c * pl.num_programs(1) + j
    base_row = logical_block * tile_rows
    eps2 = jnp.float32(eps * eps)

    def tile_value():
        # Native-dtype DMA; cast to f32 on the VPU.
        diff = x_ref[...].astype(jnp.float32) - y_ref[...].astype(jnp.float32)
        return jnp.sqrt(diff * diff + eps2)

    def accumulate(val):
        if tile_rows % 8 == 0:
            # (tile_rows,128) -> (8,128): pure vreg-to-vreg VPU adds, hidden
            # under the streaming DMA.
            out_ref[...] += val.reshape(-1, 8, 128).sum(axis=0)
        else:
            # Tiny arrays only (tile == whole array): one sublane reduce.
            out_ref[0:1, :] += jnp.sum(val, axis=0, keepdims=True)

    # Interior blocks (the overwhelming majority) take the unmasked fast path.
    # Only the single boundary block per core and any clamped duplicate blocks
    # pay for the row mask, keeping the kernel cleanly DMA-bound on v7x.
    is_interior = base_row + tile_rows <= valid_rows

    @pl.when(is_interior)
    def _():
        accumulate(tile_value())

    @pl.when(jnp.logical_not(is_interior))
    def _():
        val = tile_value()
        row_ids = jax.lax.broadcasted_iota(jnp.int32, (tile_rows, _LANE), 0)
        # Row-level mask only (the <128-element tail is handled outside the
        # kernel), so no int32 element-index overflow even for huge tensors.
        val = jnp.where(base_row + row_ids < valid_rows, val, jnp.float32(0.0))
        accumulate(val)


def _num_tensorcores():
    # Only v7x has 2 TensorCores per chip; the extra parallel axis is pure
    # overhead (clamp + duplicate accumulator block) on v5e/v6e.
    try:
        kind = jax.devices()[0].device_kind.lower()
    except Exception:
        return 1
    return 2 if "7" in kind else 1


def charbonnier_loss(x, y, eps=1e-3, tile_rows=4096, num_cores=None):
    """Pallas TPU implementation of CharbonnierLoss.forward(x, y)."""
    assert x.shape == y.shape
    n = x.size

    xf = x.reshape(-1)
    yf = y.reshape(-1)

    rows = n // _LANE
    rem = n - rows * _LANE
    eps2 = jnp.float32(float(eps) * float(eps))

    total = jnp.float32(0.0)
    if rem:
        # <128-element ragged tail: fold in with plain jnp instead of padding
        # (avoids a full-array jnp.pad copy of both HBM-bound inputs).
        dx = xf[rows * _LANE:].astype(jnp.float32) - yf[rows * _LANE:].astype(jnp.float32)
        total = total + jnp.sum(jnp.sqrt(dx * dx + eps2))

    if rows > 0:
        x2 = xf[: rows * _LANE].reshape(rows, _LANE)
        y2 = yf[: rows * _LANE].reshape(rows, _LANE)

        # Sublane-packing constraint on (tr, 128) blocks: f32 -> multiple of 8,
        # bf16/f16 -> 16, int8/fp8 -> 32 (native-dtype DMA halves HBM traffic
        # for 16-bit inputs, which is the whole cost of this kernel).
        itemsize = jnp.dtype(x.dtype).itemsize
        sub = {4: 8, 2: 16, 1: 32}.get(itemsize, 8)
        tile_rows = max(sub, (int(tile_rows) // sub) * sub)
        tr = min(tile_rows, rows)          # tr == rows (full dim) is always legal
        nblocks = pl.cdiv(rows, tr)

        ncores = _num_tensorcores() if num_cores is None else int(num_cores)
        ncores = max(1, min(ncores, nblocks))
        bpc = pl.cdiv(nblocks, ncores)

        def in_map(c, j):
            # Clamp so logical blocks past the end just re-read the last real
            # block; their contribution is fully masked to zero in-kernel.
            return (jnp.minimum(c * bpc + j, nblocks - 1), 0)

        # Double-buffered input blocks + generous allowance for f32 elementwise
        # temporaries; floored at 16 MiB (v5e's scoped-VMEM default) so larger
        # tiles compile on every generation while staying well under v7x's
        # 64 MiB per-TC physical VMEM at the default tile size.
        in_block = tr * _LANE * itemsize
        vmem_limit = max(4 * in_block + 6 * tr * _LANE * 4 + (2 << 20), 16 << 20)

        partials = pl.pallas_call(
            functools.partial(_charbonnier_kernel, eps=float(eps), valid_rows=int(rows)),
            out_shape=jax.ShapeDtypeStruct((ncores * 8, _LANE), jnp.float32),
            grid_spec=pltpu.PrefetchScalarGridSpec(
                num_scalar_prefetch=0,
                grid=(ncores, bpc),
                in_specs=[
                    pl.BlockSpec((tr, _LANE), in_map),
                    pl.BlockSpec((tr, _LANE), in_map),
                ],
                out_specs=pl.BlockSpec((8, _LANE), lambda c, j: (c, 0)),
            ),
            compiler_params=pltpu.CompilerParams(
                dimension_semantics=("parallel", "arbitrary"),
                vmem_limit_bytes=int(vmem_limit),
            ),
        )(x2, y2)
        # One tiny cross-lane reduce outside the kernel, then the mean.
        total = total + jnp.sum(partials)

    return total / jnp.float32(n)


if __name__ == "__main__":
    key = jax.random.PRNGKey(0)
    kx, ky = jax.random.split(key)

    # NCHW inputs, matching the PyTorch module's typical usage.
    x = jax.random.normal(kx, (2, 4, 16, 16), dtype=jnp.float32)
    y = jax.random.normal(ky, (2, 4, 16, 16), dtype=jnp.float32)

    loss = charbonnier_loss(x, y, eps=1e-3)
    loss = jax.block_until_ready(loss)

    # Reference check (plain JAX), same semantics as the PyTorch module.
    diff = x - y
    ref = jnp.mean(jnp.sqrt(diff * diff + jnp.float32(1e-3) ** 2))
    assert jnp.allclose(loss, ref, rtol=1e-5, atol=1e-6), (loss, ref)

    # Also exercise a ragged size (not a multiple of 128) to cover the
    # pad-free tail path.
    xr = jax.random.normal(kx, (3, 5, 7, 11), dtype=jnp.float32)
    yr = jax.random.normal(ky, (3, 5, 7, 11), dtype=jnp.float32)
    loss_r = jax.block_until_ready(charbonnier_loss(xr, yr, eps=1e-3))
    dr = xr - yr
    ref_r = jnp.mean(jnp.sqrt(dr * dr + jnp.float32(1e-3) ** 2))
    assert jnp.allclose(loss_r, ref_r, rtol=1e-5, atol=1e-6), (loss_r, ref_r)

    print("KERNEL_OK")
</pallas_src>

<mosaic_0001>
module attributes {stable_mosaic.version = 11 : i64} {
  func.func @_charbonnier_kernel(%arg0: i32, %arg1: i32, %arg2: memref<16x128xf32, #tpu.memory_space<vmem>>, %arg3: memref<16x128xf32, #tpu.memory_space<vmem>>, %arg4: memref<8x128xf32, #tpu.memory_space<vmem>>) attributes {dimension_semantics = [#tpu.dimension_semantics<parallel>, #tpu.dimension_semantics<arbitrary>], iteration_bounds = array<i64: 1, 1>, scalar_prefetch = 0 : i64, scratch_operands = 0 : i64, tpu.core_type = #tpu.core_type<tc>, window_params = [{transform_indices = @transform_0, window_bounds = array<i64: 16, 128>}, {transform_indices = @transform_1, window_bounds = array<i64: 16, 128>}, {transform_indices = @transform_2, window_bounds = array<i64: 8, 128>}]} {
    %c0_i32 = arith.constant 0 : i32
    %0 = arith.cmpi eq, %arg1, %c0_i32 : i32
    %1 = arith.extui %0 : i1 to i32
    %c0_i32_0 = arith.constant 0 : i32
    %2 = arith.cmpi ne, %1, %c0_i32_0 : i32
    scf.if %2 {
      %cst_6 = arith.constant 0.000000e+00 : f32
      %13 = vector.broadcast %cst_6 : f32 to vector<8x128xf32>
      %c0 = arith.constant 0 : index
      %c0_7 = arith.constant 0 : index
      %14 = vector.load %arg4[%c0, %c0_7] : memref<8x128xf32, #tpu.memory_space<vmem>>, vector<8x128xf32>
      tpu.vector_store %arg4[%c0, %c0_7], %13 {strides = array<i32>} : memref<8x128xf32, #tpu.memory_space<vmem>>, vector<8x128xf32>,
    } else {
    }
    %c1_i32 = arith.constant 1 : i32
    %3 = arith.muli %arg0, %c1_i32 : i32
    %4 = arith.addi %3, %arg1 : i32
    %c16_i32 = arith.constant 16 : i32
    %5 = arith.muli %4, %c16_i32 : i32
    %c16_i32_1 = arith.constant 16 : i32
    %6 = arith.addi %5, %c16_i32_1 : i32
    %c16_i32_2 = arith.constant 16 : i32
    %7 = arith.cmpi sle, %6, %c16_i32_2 : i32
    %8 = arith.extui %7 : i1 to i32
    %cst = arith.constant 9.99999997E-7 : f32
    %c0_i32_3 = arith.constant 0 : i32
    %9 = arith.cmpi ne, %8, %c0_i32_3 : i32
    scf.if %9 {
      %c0 = arith.constant 0 : index
      %c0_6 = arith.constant 0 : index
      %13 = vector.load %arg2[%c0, %c0_6] : memref<16x128xf32, #tpu.memory_space<vmem>>, vector<16x128xf32>
      %c0_7 = arith.constant 0 : index
      %c0_8 = arith.constant 0 : index
      %14 = vector.load %arg3[%c0_7, %c0_8] : memref<16x128xf32, #tpu.memory_space<vmem>>, vector<16x128xf32>
      %15 = arith.subf %13, %14 : vector<16x128xf32>
      %16 = arith.mulf %15, %15 : vector<16x128xf32>
      %17 = vector.broadcast %cst : f32 to vector<16x128xf32>
      %18 = arith.addf %16, %17 : vector<16x128xf32>
      %19 = math.sqrt %18 : vector<16x128xf32>
      %c0_9 = arith.constant 0 : index
      %c0_10 = arith.constant 0 : index
      %20 = vector.load %arg4[%c0_9, %c0_10] : memref<8x128xf32, #tpu.memory_space<vmem>>, vector<8x128xf32>
      %21 = vector.shape_cast %19 : vector<16x128xf32> to vector<2x8x128xf32>
      %cst_11 = arith.constant dense<0.000000e+00> : vector<8x128xf32>
      %22 = vector.multi_reduction <add>, %21, %cst_11 [0] : vector<2x8x128xf32> to vector<8x128xf32>
      %23 = arith.addf %20, %22 : vector<8x128xf32>
      %c0_12 = arith.constant 0 : index
      %c0_13 = arith.constant 0 : index
      %24 = vector.load %arg4[%c0_12, %c0_13] : memref<8x128xf32, #tpu.memory_space<vmem>>, vector<8x128xf32>
      tpu.vector_store %arg4[%c0_12, %c0_13], %23 {strides = array<i32>} : memref<8x128xf32, #tpu.memory_space<vmem>>, vector<8x128xf32>,
    } else {
    }
    %true = arith.constant true
    %10 = arith.xori %7, %true : i1
    %11 = arith.extui %10 : i1 to i32
    %cst_4 = arith.constant 9.99999997E-7 : f32
    %c0_i32_5 = arith.constant 0 : i32
    %12 = arith.cmpi ne, %11, %c0_i32_5 : i32
    scf.if %12 {
      %c0 = arith.constant 0 : index
      %c0_6 = arith.constant 0 : index
      %13 = vector.load %arg2[%c0, %c0_6] : memref<16x128xf32, #tpu.memory_space<vmem>>, vector<16x128xf32>
      %c0_7 = arith.constant 0 : index
      %c0_8 = arith.constant 0 : index
      %14 = vector.load %arg3[%c0_7, %c0_8] : memref<16x128xf32, #tpu.memory_space<vmem>>, vector<16x128xf32>
      %15 = arith.subf %13, %14 : vector<16x128xf32>
      %16 = arith.mulf %15, %15 : vector<16x128xf32>
      %17 = vector.broadcast %cst_4 : f32 to vector<16x128xf32>
      %18 = arith.addf %16, %17 : vector<16x128xf32>
      %19 = math.sqrt %18 : vector<16x128xf32>
      %20 = tpu.iota {dimensions = array<i32: 0>} : vector<16x128xi32>
      %21 = vector.broadcast %5 : i32 to vector<16x128xi32>
      %22 = arith.addi %21, %20 : vector<16x128xi32>
      %c16_i32_9 = arith.constant 16 : i32
      %23 = vector.broadcast %c16_i32_9 : i32 to vector<16x128xi32>
      %24 = arith.cmpi slt, %22, %23 : vector<16x128xi32>
      %cst_10 = arith.constant 0.000000e+00 : f32
      %25 = vector.broadcast %cst_10 : f32 to vector<16x128xf32>
      %26 = arith.select %24, %19, %25 : vector<16x128xi1>, vector<16x128xf32>
      %c0_11 = arith.constant 0 : index
      %c0_12 = arith.constant 0 : index
      %27 = vector.load %arg4[%c0_11, %c0_12] : memref<8x128xf32, #tpu.memory_space<vmem>>, vector<8x128xf32>
      %28 = vector.shape_cast %26 : vector<16x128xf32> to vector<2x8x128xf32>
      %cst_13 = arith.constant dense<0.000000e+00> : vector<8x128xf32>
      %29 = vector.multi_reduction <add>, %28, %cst_13 [0] : vector<2x8x128xf32> to vector<8x128xf32>
      %30 = arith.addf %27, %29 : vector<8x128xf32>
      %c0_14 = arith.constant 0 : index
      %c0_15 = arith.constant 0 : index
      %31 = vector.load %arg4[%c0_14, %c0_15] : memref<8x128xf32, #tpu.memory_space<vmem>>, vector<8x128xf32>
      tpu.vector_store %arg4[%c0_14, %c0_15], %30 {strides = array<i32>} : memref<8x128xf32, #tpu.memory_space<vmem>>, vector<8x128xf32>,
    } else {
    }
    return
  }
  func.func @transform_0(%arg0: i32, %arg1: i32) -> (i32, i32) {
    %c1_i32 = arith.constant 1 : i32
    %0 = arith.muli %arg0, %c1_i32 : i32
    %1 = arith.addi %0, %arg1 : i32
    %c0_i32 = arith.constant 0 : i32
    %2 = arith.minsi %1, %c0_i32 : i32
    %c0_i32_0 = arith.constant 0 : i32
    %c0_i32_1 = arith.constant 0 : i32
    return %2, %c0_i32_0 : i32, i32
  }
  func.func @transform_1(%arg0: i32, %arg1: i32) -> (i32, i32) {
    %c1_i32 = arith.constant 1 : i32
    %0 = arith.muli %arg0, %c1_i32 : i32
    %1 = arith.addi %0, %arg1 : i32
    %c0_i32 = arith.constant 0 : i32
    %2 = arith.minsi %1, %c0_i32 : i32
    %c0_i32_0 = arith.constant 0 : i32
    %c0_i32_1 = arith.constant 0 : i32
    return %2, %c0_i32_0 : i32, i32
  }
  func.func @transform_2(%arg0: i32, %arg1: i32) -> (i32, i32) {
    %c0_i32 = arith.constant 0 : i32
    %c0_i32_0 = arith.constant 0 : i32
    return %arg0, %c0_i32 : i32, i32
  }
}

</mosaic_0001>

<llo_original>
// kernel: tpu_custom_call.1
$region0: #{tpu_custom_call.1}
  #allocation0 [shape = 'u32[]', space=smem, size = 0x4, offset = 0x4, fixed_abs, tag = 'smem constant byte address 0x4 - core index']
  #allocation1 [shape = 'u32[144,128]{1,0:T(1,128)}', space=vmem, size = 0x12000, scoped, tag = 'internal scratch']
  %s0 = inlined_call_operand.hbm [shape: f32[16,128], index: 0, kind: input, shape index: {}]
  %s1 = inlined_call_operand.hbm [shape: f32[16,128], index: 1, kind: input, shape index: {}]
  %s2 = inlined_call_operand.hbm [shape: f32[8,128], index: 2, kind: output, shape index: {}]
  %s3 = sld [smem:[#allocation0]]
  $region38: #{tpu_custom_call.1} parent=0
    _
  %s5 = ssub.s32 1, %s3
  %s6 = scalar_select 0, %s5, %s3
  $region1: #{tpu_custom_call.1} parent=0
    #allocation2 [shape = 'u8[8192]{0}', space=vmem, size = 0x2000, scoped, tag = 'input window, operand 0, single buffered']
    #allocation3 [shape = 's32[1]{0}', space=sflag, size = 0x4, scoped, tag = 'scoped memory for tpu_custom_call.1']
    #allocation4 [shape = 's32[1]{0}', space=sflag, size = 0x4, scoped, tag = 'scoped memory for tpu_custom_call.1']
    #allocation5 [shape = 'u8[8192]{0}', space=vmem, size = 0x2000, scoped, tag = 'input window, operand 1, single buffered']
    #allocation6 [shape = 's32[1]{0}', space=sflag, size = 0x4, scoped, tag = 'scoped memory for tpu_custom_call.1']
    #allocation7 [shape = 'u8[4096]{0}', space=vmem, size = 0x1000, scoped, tag = 'output window, operand 0, single buffered']
    %7 = vsyncpa [#allocation3], 0
    %8 = vsyncpa [#allocation6], 0
    %9 = vsyncpa [#allocation4], 0
    // Predicated region
    $region2: #{tpu_custom_call.1} parent=1 // pred_check
      _
    $region3: #{tpu_custom_call.1} parent=1 // pred_check_branch
      %11 = sbr.rel (0) target = $region5
    $region4: #{tpu_custom_call.1} parent=1 // pred_region
      %s12 = sadd.s32 0, 0
      %p13 = scmp.lt.s32.totalorder %s12, 0
      %s14 = scalar_select %p13, %s12, 0
      %s15 = smul.u32 2, %s14
      %s17 = ssub.s32 256, 256
      %18 = vsyncadd [#allocation3], %s17
      %s19 = smul.addr %s15, 128
      %s20 = scalar_lea.hbm %s0, %s19
      %s21 = sshll.u32 [#allocation2], 4
      %s22 = int_to_ptr.vmem [resolvable:$true] %s21
      %27 = dma.hbm_to_vmem [thread:$0]  %s20, 256, %s22, [#allocation3], 128, 128, 8
    $region5: #{tpu_custom_call.1} parent=1 // pred_fallthru
      _
    // Predicated region
    $region6: #{tpu_custom_call.1} parent=1 // pred_check
      _
    $region7: #{tpu_custom_call.1} parent=1 // pred_check_branch
      %29 = sbr.rel (0) target = $region9
    $region8: #{tpu_custom_call.1} parent=1 // pred_region
      %s30 = sadd.s32 0, 0
      %p31 = scmp.lt.s32.totalorder %s30, 0
      %s32 = scalar_select %p31, %s30, 0
      %s33 = smul.u32 2, %s32
      %s35 = ssub.s32 256, 256
      %36 = vsyncadd [#allocation6], %s35
      %s37 = smul.addr %s33, 128
      %s38 = scalar_lea.hbm %s1, %s37
      %s39 = sshll.u32 [#allocation5], 4
      %s40 = int_to_ptr.vmem [resolvable:$true] %s39
      %45 = dma.hbm_to_vmem [thread:$0]  %s38, 256, %s40, [#allocation6], 128, 128, 8
    $region9: #{tpu_custom_call.1} parent=1 // pred_fallthru
      _
    // Predicated region
    $region10: #{tpu_custom_call.1} parent=1 // pred_check
      _
    $region11: #{tpu_custom_call.1} parent=1 // pred_check_branch
      %47 = sbr.rel (0) target = $region13
    $region12: #{tpu_custom_call.1} parent=1 // pred_region
      %48 = dma.done [#allocation3], 256
    $region13: #{tpu_custom_call.1} parent=1 // pred_fallthru
      _
    // Predicated region
    $region14: #{tpu_custom_call.1} parent=1 // pred_check
      _
    $region15: #{tpu_custom_call.1} parent=1 // pred_check_branch
      %50 = sbr.rel (0) target = $region17
    $region16: #{tpu_custom_call.1} parent=1 // pred_region
      %51 = dma.done [#allocation6], 256
    $region17: #{tpu_custom_call.1} parent=1 // pred_fallthru
      _
    %s52 = sadd.s32 0, 0
    %p53 = scmp.lt.s32.totalorder %s52, 0
    %s54 = scalar_select %p53, %s52, 0
    %s55 = smul.u32 2, %s54
    %s56 = sadd.s32 0, 0
    %p57 = scmp.lt.s32.totalorder %s56, 0
    %s58 = scalar_select %p57, %s56, 0
    %s59 = smul.u32 2, %s58
    %p60 = scmp.eq.s32.totalorder 0, 0
    // Predicated region
    $region18: #{tpu_custom_call.1} parent=1 // pred_check
      %p61 = pneg %p60
    $region19: #{tpu_custom_call.1} parent=1 // pred_check_branch
      %63 = sbr.rel (%p61) target = $region21
    $region20: #{tpu_custom_call.1} parent=1 // pred_region
      %64 = vst [vmem:[#allocation7] sm:$0xff] 0.0
    $region21: #{tpu_custom_call.1} parent=1 // pred_fallthru
      _
    %s65 = sadd.s32 0, 0
    %s66 = smul.u32 %s65, 16
    %s67 = sadd.s32 %s66, 16
    %p68 = scmp.le.s32.totalorder %s67, 16
    // Predicated region
    $region22: #{tpu_custom_call.1} parent=1 // pred_check
      %p69 = pneg %p68
    $region23: #{tpu_custom_call.1} parent=1 // pred_check_branch
      %71 = sbr.rel (%p69) target = $region25
    $region24: #{tpu_custom_call.1} parent=1 // pred_region
      %v72 = vld [vmem:[#allocation2] sm:$0xff]
      %v73 = vld [vmem:[#allocation2 + $0x8] sm:$0xff]
      %v74 = vld [vmem:[#allocation5] sm:$0xff]
      %v75 = vld [vmem:[#allocation5 + $0x8] sm:$0xff]
      %v76 = vsub.f32 %v72, %v74
      %v77 = vsub.f32 %v73, %v75
      %v78 = vmul.f32 %v76, %v76
      %v79 = vmul.f32 %v77, %v77
      %v80 = vadd.f32 %v78, 1e-06
      %v81 = vadd.f32 %v79, 1e-06
      %v82 = vrsqrt.pop %v80
      %v83 = vmul.f32 %v80, %v82
      %vm84 = vcmp.eq.f32.partialorder %v80, inf
      %v85 = vsel %vm84, %v80, %v83
      %vm86 = vcmp.eq.f32.partialorder %v80, 0.0
      %v87 = vand.u32 %v80, 2147483648
      %v88 = vsel %vm86, %v87, %v85
      %v89 = vrsqrt.pop %v81
      %v90 = vmul.f32 %v81, %v89
      %vm91 = vcmp.eq.f32.partialorder %v81, inf
      %v92 = vsel %vm91, %v81, %v90
      %vm93 = vcmp.eq.f32.partialorder %v81, 0.0
      %v94 = vand.u32 %v81, 2147483648
      %v95 = vsel %vm93, %v94, %v92
      %v96 = vld [vmem:[#allocation7] sm:$0xff]
      %v97 = vadd.f32 %v88, %v95
      %v98 = vadd.f32 %v96, %v97
      %99 = vst [vmem:[#allocation7] sm:$0xff] %v98
    $region25: #{tpu_custom_call.1} parent=1 // pred_fallthru
      _
    %p100 = pneg %p68
    // Predicated region
    $region26: #{tpu_custom_call.1} parent=1 // pred_check
      _
    $region27: #{tpu_custom_call.1} parent=1 // pred_check_branch
      %102 = sbr.rel (%p68) target = $region29
    $region28: #{tpu_custom_call.1} parent=1 // pred_region
      %v103 = vld [vmem:[#allocation2] sm:$0xff]
      %v104 = vld [vmem:[#allocation2 + $0x8] sm:$0xff]
      %v105 = vld [vmem:[#allocation5] sm:$0xff]
      %v106 = vld [vmem:[#allocation5 + $0x8] sm:$0xff]
      %v107 = vsub.f32 %v103, %v105
      %v108 = vsub.f32 %v104, %v106
      %v109 = vmul.f32 %v107, %v107
      %v110 = vmul.f32 %v108, %v108
      %v111 = vadd.f32 %v109, 1e-06
      %v112 = vadd.f32 %v110, 1e-06
      %v113 = vrsqrt.pop %v111
      %v114 = vmul.f32 %v111, %v113
      %vm115 = vcmp.eq.f32.partialorder %v111, inf
      %v116 = vsel %vm115, %v111, %v114
      %vm117 = vcmp.eq.f32.partialorder %v111, 0.0
      %v118 = vand.u32 %v111, 2147483648
      %v119 = vsel %vm117, %v118, %v116
      %v120 = vrsqrt.pop %v112
      %v121 = vmul.f32 %v112, %v120
      %vm122 = vcmp.eq.f32.partialorder %v112, inf
      %v123 = vsel %vm122, %v112, %v121
      %vm124 = vcmp.eq.f32.partialorder %v112, 0.0
      %v125 = vand.u32 %v112, 2147483648
      %v126 = vsel %vm124, %v125, %v123
      %v127 = vlaneseq
      %v128 = vshrl.u32 %v127, 7
      %v129 = vadd.s32 %v128, 8
      %v130 = vstv %s66
      %v131 = vadd.s32 %v130, %v128
      %v132 = vadd.s32 %v130, %v129
      %vm133 = vcmp.lt.s32.totalorder %v131, 16
      %vm134 = vcmp.lt.s32.totalorder %v132, 16
      %v135 = vsel %vm133, %v119, 0.0
      %v136 = vsel %vm134, %v126, 0.0
      %v137 = vld [vmem:[#allocation7] sm:$0xff]
      %v138 = vadd.f32 %v135, %v136
      %v139 = vadd.f32 %v137, %v138
      %140 = vst [vmem:[#allocation7] sm:$0xff] %v139
    $region29: #{tpu_custom_call.1} parent=1 // pred_fallthru
      _
    // Predicated region
    $region30: #{tpu_custom_call.1} parent=1 // pred_check
      _
    $region31: #{tpu_custom_call.1} parent=1 // pred_check_branch
      %142 = sbr.rel (0) target = $region33
    $region32: #{tpu_custom_call.1} parent=1 // pred_region
      %s144 = ssub.s32 128, 128
      %145 = vsyncadd [#allocation4], %s144
      %s147 = sshll.u32 [#allocation7], 4
      %s148 = int_to_ptr.vmem [resolvable:$true] %s147
      %150 = dma.vmem_to_hbm [thread:$0]  %s148, 128, %s2, [#allocation4]
    $region33: #{tpu_custom_call.1} parent=1 // pred_fallthru
      _
    // Predicated region
    $region34: #{tpu_custom_call.1} parent=1 // pred_check
      _
    $region35: #{tpu_custom_call.1} parent=1 // pred_check_branch
      %152 = sbr.rel (0) target = $region37
    $region36: #{tpu_custom_call.1} parent=1 // pred_region
      %153 = dma.done [#allocation4], 128
    $region37: #{tpu_custom_call.1} parent=1 // pred_fallthru
      _
    %154 = vsyncpa [#allocation3], 1
    %155 = vsyncpa [#allocation6], 1
    %156 = vsyncpa [#allocation4], 1

</llo_original>
